<compile_context>
chip_gen: v5e
topology: v5e:2x2
jax: 0.10.0
libtpu: 0.0.40
codegen_flags: <defaults>
</compile_context>

<pallas_src>
import functools

import numpy as np

import jax
import jax.numpy as jnp
from jax.experimental import pallas as pl
from jax.experimental.pallas import tpu as pltpu


def _round_up(x, m):
    return ((x + m - 1) // m) * m


def _choose_mol_batch(M, S, target_rows=512):
    """Molecules per grid step: aim for ~target_rows node rows per fused linear
    matmul (fills the MXU), keep B a multiple of 8 sublanes, and rebalance so
    the last grid step isn't tiny (keeps both v7x TensorCores busy)."""
    B = _round_up(max(1, pl.cdiv(target_rows, S)), 8)
    B = min(B, _round_up(M, 8))
    if M > B:
        steps = pl.cdiv(M, B)
        B = min(B, _round_up(pl.cdiv(M, steps), 8))
    return max(B, 8)


# ----------------------------- Pallas kernel ------------------------------- #
def _mpnn_kernel(adj_ref, x_ref, wt_ref, b_ref, out_ref, *,
                 layer_hidden, compute_dtype):
    """Batched per-molecule MPNN update + readout (B molecules per grid step).

    Block shapes seen by the kernel:
      adj_ref : [B, S, S]    A' = A + I (real diag only), 0/1-ish -> exact bf16
      x_ref   : [B, S, Dp]   embedded node vectors (f32, padding rows zero)
      wt_ref  : [L, Dp, Dp]  pre-transposed linear weights (compute_dtype)
      b_ref   : [L, 1, Dp]   linear biases (f32)
      out_ref : [B, Dp]      molecular vectors (f32)
    """
    B, S, Dp = x_ref.shape
    adj = adj_ref[...]                       # [B, S, S]
    v = x_ref[...]                           # [B, S, Dp] f32

    for layer in range(layer_hidden):        # static unroll (layer_hidden small)
        wt = wt_ref[layer]                   # [Dp, Dp] already W^T
        bias = b_ref[layer]                  # [1, Dp]
        # Fused linear over all B*S node rows: one MXU matmul per layer.
        h = jnp.dot(v.reshape(B * S, Dp).astype(compute_dtype), wt,
                    preferred_element_type=jnp.float32) + bias
        h = jnp.maximum(h, 0.0).reshape(B, S, Dp)          # relu on VPU (f32)
        # Message passing with residual folded in:  v = (A + I) @ h.
        v = jnp.einsum('bij,bjd->bid', adj, h.astype(compute_dtype),
                       preferred_element_type=jnp.float32)

    # Readout = per-molecule node sum.  Padding node rows of v are exactly
    # zero (A' has all-zero padding rows and x was zero-padded), so no mask is
    # needed; the sublane reduce runs on VPU/XLU, off the MXU.
    out_ref[...] = jnp.sum(v, axis=1)


def mpnn_forward_pallas(adj_b, x_b, wt, b, *, layer_hidden, mol_batch,
                        compute_dtype=jnp.bfloat16):
    Mp, S, Dp = x_b.shape
    L = wt.shape[0]
    B = mol_batch
    assert L == layer_hidden
    assert Mp % B == 0

    kernel = functools.partial(_mpnn_kernel, layer_hidden=layer_hidden,
                               compute_dtype=compute_dtype)

    # Double-buffered pipeline blocks + grid-invariant weights/biases +
    # headroom for compute temporaries.  Capped at 48 MiB so v7x (64 MiB
    # physical per-TC) keeps slack for Mosaic internal scratch.
    cds = jnp.dtype(compute_dtype).itemsize
    per_step = B * S * S * cds + B * S * Dp * 4 + B * Dp * 4
    resident = L * Dp * Dp * cds + L * Dp * 4
    vmem_limit = int(min(max(4 * (2 * per_step + 2 * resident), 8 << 20),
                         48 << 20))

    out = pl.pallas_call(
        kernel,
        out_shape=jax.ShapeDtypeStruct((Mp, Dp), jnp.float32),
        grid=(Mp // B,),
        in_specs=[
            pl.BlockSpec((B, S, S), lambda k: (k, 0, 0)),    # adjacency (A+I)
            pl.BlockSpec((B, S, Dp), lambda k: (k, 0, 0)),   # node vectors
            pl.BlockSpec((L, Dp, Dp), lambda k: (0, 0, 0)),  # weights (grid-invariant)
            pl.BlockSpec((L, 1, Dp), lambda k: (0, 0, 0)),   # biases  (grid-invariant)
        ],
        out_specs=pl.BlockSpec((B, Dp), lambda k: (k, 0)),
        compiler_params=pltpu.CompilerParams(
            dimension_semantics=("parallel",),
            vmem_limit_bytes=vmem_limit,
        ),
    )(adj_b, x_b, wt, b)
    return out                                               # [Mp, Dp]


# ------------------------------ Packing glue -------------------------------- #
def prepare_batch(params, inputs, *, compute_dtype=jnp.bfloat16, mol_batch=None):
    """Pack ragged per-molecule inputs into padded, TPU-friendly batches.

    Packing is done with host-side numpy (no per-molecule XLA scatters); the
    embedding gather is a single vectorized jnp.take.
    """
    fingerprints_list, adjacencies_list, molecular_sizes = inputs
    M = len(molecular_sizes)
    D = params["embed"].shape[1]
    L = params["W"].shape[0]

    itemsize = jnp.dtype(compute_dtype).itemsize
    sublane_pack = max(8, 32 // itemsize)        # 8 f32 / 16 bf16 / 32 int8|fp8
    S = _round_up(max(molecular_sizes), sublane_pack)
    Dp = _round_up(D, 128)                       # lane-dense feature dim

    B = mol_batch if mol_batch is not None else _choose_mol_batch(M, S)
    Mp = _round_up(M, B)

    ids = np.zeros((Mp, S), np.int32)
    node_mask = np.zeros((Mp, S, 1), np.float32)
    adj_np = np.zeros((Mp, S, S), np.float32)
    for k, (fp, a, s) in enumerate(zip(fingerprints_list, adjacencies_list,
                                       molecular_sizes)):
        ids[k, :s] = np.asarray(fp, np.int32)
        node_mask[k, :s, 0] = 1.0
        blk = np.array(a, dtype=np.float32)
        blk[np.arange(s), np.arange(s)] += 1.0   # fold residual: A' = A + I
        adj_np[k, :s, :s] = blk

    # Embedding lookup: one vectorized gather; padding rows zeroed by the mask.
    # TODO(synk): fuse the gather into the kernel via scalar-prefetched row DMA.
    x = jnp.take(params["embed"], jnp.asarray(ids), axis=0)          # [Mp,S,D]
    x = jnp.pad(x, ((0, 0), (0, 0), (0, Dp - D)))                    # lane pad
    x_b = x * jnp.asarray(node_mask)                                 # f32

    # Pre-transposed, lane-padded weights:  y = x @ W^T + b  ->  y = x @ Wt + b
    wt = jnp.swapaxes(params["W"], 1, 2)
    wt = jnp.pad(wt, ((0, 0), (0, Dp - D), (0, Dp - D))).astype(compute_dtype)
    b = jnp.pad(params["b"], ((0, 0), (0, 0), (0, Dp - D)))          # [L,1,Dp]

    adj_b = jnp.asarray(adj_np).astype(compute_dtype)
    return adj_b, x_b, wt, b, B, Mp, S, Dp


def molecular_gnn_forward(params, inputs, *, compute_dtype=jnp.bfloat16,
                          mol_batch=None):
    M = len(inputs[2])
    D = params["embed"].shape[1]
    L = params["W"].shape[0]
    adj_b, x_b, wt, b, B, _, _, _ = prepare_batch(
        params, inputs, compute_dtype=compute_dtype, mol_batch=mol_batch)
    out = mpnn_forward_pallas(adj_b, x_b, wt, b, layer_hidden=L, mol_batch=B,
                              compute_dtype=compute_dtype)
    return out[:M, :D]                                               # [M, D]


def reference_forward(params, inputs):
    """Pure-JAX reference mirroring the PyTorch module exactly (f32)."""
    fingerprints_list, adjacencies_list, molecular_sizes = inputs
    fingerprints = jnp.concatenate(fingerprints_list)
    N = int(sum(molecular_sizes))
    adj = jnp.zeros((N, N), jnp.float32)
    i = 0
    for a, s in zip(adjacencies_list, molecular_sizes):
        adj = adj.at[i:i + s, i:i + s].set(a.astype(jnp.float32))
        i += s
    v = jnp.take(params["embed"], fingerprints, axis=0)
    for l in range(params["W"].shape[0]):
        h = jax.nn.relu(v @ params["W"][l].T + params["b"][l][0])
        v = h + adj @ h
    outs = []
    i = 0
    for s in molecular_sizes:
        outs.append(jnp.sum(v[i:i + s], axis=0))
        i += s
    return jnp.stack(outs)


# ---------------------------------- main ----------------------------------- #
if __name__ == "__main__":
    N_FINGERPRINT = 50
    DIM = 32
    LAYER_HIDDEN = 2
    MOL_SIZES = [3, 5, 8]          # 3 molecules, 16 total nodes

    key = jax.random.PRNGKey(0)
    k_embed, k_w, k_b, k_fp, k_adj = jax.random.split(key, 5)

    params = {
        "embed": jax.random.normal(k_embed, (N_FINGERPRINT, DIM), jnp.float32),
        "W": jax.random.normal(k_w, (LAYER_HIDDEN, DIM, DIM), jnp.float32) * 0.1,
        "b": jax.random.normal(k_b, (LAYER_HIDDEN, 1, DIM), jnp.float32) * 0.1,
    }

    fp_keys = jax.random.split(k_fp, len(MOL_SIZES))
    adj_keys = jax.random.split(k_adj, len(MOL_SIZES))
    fingerprints_list = [
        jax.random.randint(fk, (s,), 0, N_FINGERPRINT, jnp.int32)
        for fk, s in zip(fp_keys, MOL_SIZES)
    ]
    adjacencies_list = []
    for ak, s in zip(adj_keys, MOL_SIZES):
        a = (jax.random.uniform(ak, (s, s)) > 0.5).astype(jnp.float32)
        a = jnp.maximum(a, a.T)    # symmetric 0/1 adjacency
        adjacencies_list.append(a)

    inputs = (fingerprints_list, adjacencies_list, MOL_SIZES)

    ref = jax.block_until_ready(reference_forward(params, inputs))

    # Shipped path: bf16 MXU operands (adjacency is 0/1 -> exact), f32 accum.
    out = jax.block_until_ready(
        molecular_gnn_forward(params, inputs, compute_dtype=jnp.bfloat16))

    assert out.shape == (len(MOL_SIZES), DIM)
    scale = float(jnp.max(jnp.abs(ref))) + 1e-8
    err = float(jnp.max(jnp.abs(out - ref))) / scale
    assert err < 5e-2, f"kernel mismatch vs reference: rel err {err:.3e}"

    print("KERNEL_OK")
</pallas_src>

<mosaic_0001>
module attributes {stable_mosaic.version = 11 : i64} {
  func.func @_mpnn_kernel(%arg0: i32, %arg1: memref<8x16x16xbf16, #tpu.memory_space<vmem>>, %arg2: memref<8x16x128xf32, #tpu.memory_space<vmem>>, %arg3: memref<2x128x128xbf16, #tpu.memory_space<vmem>>, %arg4: memref<2x1x128xf32, #tpu.memory_space<vmem>>, %arg5: memref<8x128xf32, #tpu.memory_space<vmem>>) attributes {dimension_semantics = [#tpu.dimension_semantics<parallel>], iteration_bounds = array<i64: 1>, scalar_prefetch = 0 : i64, scratch_operands = 0 : i64, tpu.core_type = #tpu.core_type<tc>, window_params = [{transform_indices = @transform_0, window_bounds = array<i64: 8, 16, 16>}, {transform_indices = @transform_1, window_bounds = array<i64: 8, 16, 128>}, {pipeline_mode = #tpu.pipeline_mode<synchronous>, transform_indices = @transform_2, window_bounds = array<i64: 2, 128, 128>}, {pipeline_mode = #tpu.pipeline_mode<synchronous>, transform_indices = @transform_3, window_bounds = array<i64: 2, 1, 128>}, {transform_indices = @transform_4, window_bounds = array<i64: 8, 128>}]} {
    %c0 = arith.constant 0 : index
    %c0_0 = arith.constant 0 : index
    %c0_1 = arith.constant 0 : index
    %0 = vector.load %arg1[%c0, %c0_0, %c0_1] : memref<8x16x16xbf16, #tpu.memory_space<vmem>>, vector<8x16x16xbf16>
    %c0_2 = arith.constant 0 : index
    %c0_3 = arith.constant 0 : index
    %c0_4 = arith.constant 0 : index
    %1 = vector.load %arg2[%c0_2, %c0_3, %c0_4] : memref<8x16x128xf32, #tpu.memory_space<vmem>>, vector<8x16x128xf32>
    %c0_5 = arith.constant 0 : index
    %c0_6 = arith.constant 0 : index
    %c0_7 = arith.constant 0 : index
    %2 = vector.load %arg3[%c0_5, %c0_6, %c0_7] : memref<2x128x128xbf16, #tpu.memory_space<vmem>>, vector<1x128x128xbf16>
    %3 = vector.shape_cast %2 : vector<1x128x128xbf16> to vector<128x128xbf16>
    %c0_8 = arith.constant 0 : index
    %c0_9 = arith.constant 0 : index
    %c0_10 = arith.constant 0 : index
    %4 = vector.load %arg4[%c0_8, %c0_9, %c0_10] : memref<2x1x128xf32, #tpu.memory_space<vmem>>, vector<1x1x128xf32>
    %5 = vector.shape_cast %4 : vector<1x1x128xf32> to vector<1x128xf32>
    %6 = vector.shape_cast %1 : vector<8x16x128xf32> to vector<128x128xf32>
    %7 = arith.truncf %6 : vector<128x128xf32> to vector<128x128xbf16>
    %cst = arith.constant dense<0.000000e+00> : vector<128x128xf32>
    %8 = tpu.matmul %7, %3, %cst {dimension_numbers = #tpu.dot_dimension_numbers<[1], [0], [0], [1], [0, 0, 1, 1], [], []>} : vector<128x128xbf16>, vector<128x128xbf16>, vector<128x128xf32> -> vector<128x128xf32>
    %9 = vector.broadcast %5 : vector<1x128xf32> to vector<128x128xf32>
    %10 = arith.addf %8, %9 : vector<128x128xf32>
    %cst_11 = arith.constant 0.000000e+00 : f32
    %11 = vector.broadcast %cst_11 : f32 to vector<128x128xf32>
    %12 = arith.maximumf %10, %11 : vector<128x128xf32>
    %13 = vector.shape_cast %12 : vector<128x128xf32> to vector<8x16x128xf32>
    %14 = arith.truncf %13 : vector<8x16x128xf32> to vector<8x16x128xbf16>
    "tpu.trace_start"() <{level = 10 : i32, message = "bij,bjd->bid"}> : () -> ()
    %cst_12 = arith.constant dense<0.000000e+00> : vector<8x16x128xf32>
    %15 = tpu.matmul %0, %14, %cst_12 {dimension_numbers = #tpu.dot_dimension_numbers<[2], [1], [1], [2], [0, 0, 0, 1, 1, 2], [0], [0]>} : vector<8x16x16xbf16>, vector<8x16x128xbf16>, vector<8x16x128xf32> -> vector<8x16x128xf32>
    "tpu.trace_stop"() : () -> ()
    %c1 = arith.constant 1 : index
    %c0_13 = arith.constant 0 : index
    %c0_14 = arith.constant 0 : index
    %16 = vector.load %arg3[%c1, %c0_13, %c0_14] : memref<2x128x128xbf16, #tpu.memory_space<vmem>>, vector<1x128x128xbf16>
    %17 = vector.shape_cast %16 : vector<1x128x128xbf16> to vector<128x128xbf16>
    %c1_15 = arith.constant 1 : index
    %c0_16 = arith.constant 0 : index
    %c0_17 = arith.constant 0 : index
    %18 = vector.load %arg4[%c1_15, %c0_16, %c0_17] : memref<2x1x128xf32, #tpu.memory_space<vmem>>, vector<1x1x128xf32>
    %19 = vector.shape_cast %18 : vector<1x1x128xf32> to vector<1x128xf32>
    %20 = vector.shape_cast %15 : vector<8x16x128xf32> to vector<128x128xf32>
    %21 = arith.truncf %20 : vector<128x128xf32> to vector<128x128xbf16>
    %cst_18 = arith.constant dense<0.000000e+00> : vector<128x128xf32>
    %22 = tpu.matmul %21, %17, %cst_18 {dimension_numbers = #tpu.dot_dimension_numbers<[1], [0], [0], [1], [0, 0, 1, 1], [], []>} : vector<128x128xbf16>, vector<128x128xbf16>, vector<128x128xf32> -> vector<128x128xf32>
    %23 = vector.broadcast %19 : vector<1x128xf32> to vector<128x128xf32>
    %24 = arith.addf %22, %23 : vector<128x128xf32>
    %cst_19 = arith.constant 0.000000e+00 : f32
    %25 = vector.broadcast %cst_19 : f32 to vector<128x128xf32>
    %26 = arith.maximumf %24, %25 : vector<128x128xf32>
    %27 = vector.shape_cast %26 : vector<128x128xf32> to vector<8x16x128xf32>
    %28 = arith.truncf %27 : vector<8x16x128xf32> to vector<8x16x128xbf16>
    "tpu.trace_start"() <{level = 10 : i32, message = "bij,bjd->bid"}> : () -> ()
    %cst_20 = arith.constant dense<0.000000e+00> : vector<8x16x128xf32>
    %29 = tpu.matmul %0, %28, %cst_20 {dimension_numbers = #tpu.dot_dimension_numbers<[2], [1], [1], [2], [0, 0, 0, 1, 1, 2], [0], [0]>} : vector<8x16x16xbf16>, vector<8x16x128xbf16>, vector<8x16x128xf32> -> vector<8x16x128xf32>
    "tpu.trace_stop"() : () -> ()
    %cst_21 = arith.constant dense<0.000000e+00> : vector<8x128xf32>
    %30 = vector.multi_reduction <add>, %29, %cst_21 [1] : vector<8x16x128xf32> to vector<8x128xf32>
    %c0_22 = arith.constant 0 : index
    %c0_23 = arith.constant 0 : index
    %31 = vector.load %arg5[%c0_22, %c0_23] : memref<8x128xf32, #tpu.memory_space<vmem>>, vector<8x128xf32>
    tpu.vector_store %arg5[%c0_22, %c0_23], %30 {strides = array<i32>} : memref<8x128xf32, #tpu.memory_space<vmem>>, vector<8x128xf32>,
    return
  }
  func.func @transform_0(%arg0: i32) -> (i32, i32, i32) {
    %c0_i32 = arith.constant 0 : i32
    %c0_i32_0 = arith.constant 0 : i32
    %c0_i32_1 = arith.constant 0 : i32
    return %arg0, %c0_i32, %c0_i32_0 : i32, i32, i32
  }
  func.func @transform_1(%arg0: i32) -> (i32, i32, i32) {
    %c0_i32 = arith.constant 0 : i32
    %c0_i32_0 = arith.constant 0 : i32
    %c0_i32_1 = arith.constant 0 : i32
    return %arg0, %c0_i32, %c0_i32_0 : i32, i32, i32
  }
  func.func @transform_2(%arg0: i32) -> (i32, i32, i32) {
    %c0_i32 = arith.constant 0 : i32
    %c0_i32_0 = arith.constant 0 : i32
    %c0_i32_1 = arith.constant 0 : i32
    %c0_i32_2 = arith.constant 0 : i32
    return %c0_i32, %c0_i32_0, %c0_i32_1 : i32, i32, i32
  }
  func.func @transform_3(%arg0: i32) -> (i32, i32, i32) {
    %c0_i32 = arith.constant 0 : i32
    %c0_i32_0 = arith.constant 0 : i32
    %c0_i32_1 = arith.constant 0 : i32
    %c0_i32_2 = arith.constant 0 : i32
    return %c0_i32, %c0_i32_0, %c0_i32_1 : i32, i32, i32
  }
  func.func @transform_4(%arg0: i32) -> (i32, i32) {
    %c0_i32 = arith.constant 0 : i32
    %c0_i32_0 = arith.constant 0 : i32
    return %arg0, %c0_i32 : i32, i32
  }
}

</mosaic_0001>

<llo_original>
// kernel: tpu_custom_call.1
$region0: #{tpu_custom_call.1}
  #allocation0 [shape = 'u32[]', space=smem, size = 0x4, offset = 0x4, fixed_abs, tag = 'smem constant byte address 0x4 - core index']
  #allocation1 [shape = 'u32[72,128]{1,0:T(1,128)}', space=vmem, size = 0x9000, scoped, tag = 'internal scratch']
  %s0 = inlined_call_operand.hbm [shape: bf16[8,16,16], index: 0, kind: input, shape index: {}]
  %s1 = inlined_call_operand.hbm [shape: f32[8,16,128], index: 1, kind: input, shape index: {}]
  %s2 = inlined_call_operand.hbm [shape: bf16[2,128,128], index: 2, kind: input, shape index: {}]
  %s3 = inlined_call_operand.vmem [shape: f32[2,1,128], index: 3, kind: input, shape index: {}]
  %s4 = inlined_call_operand.hbm [shape: f32[8,128], index: 4, kind: output, shape index: {}]
  %s5 = sld [smem:[#allocation0]]
  $region38: #{tpu_custom_call.1} parent=0
    _
  %s7 = ssub.s32 1, %s5
  %s8 = scalar_select 0, %s7, %s5
  $region1: #{tpu_custom_call.1} parent=0
    #allocation2 [shape = 'u8[32768]{0}', space=vmem, size = 0x8000, scoped, tag = 'input window, operand 0, single buffered']
    #allocation3 [shape = 's32[1]{0}', space=sflag, size = 0x4, scoped, tag = 'scoped memory for tpu_custom_call.1']
    #allocation4 [shape = 's32[1]{0}', space=sflag, size = 0x4, scoped, tag = 'scoped memory for tpu_custom_call.1']
    #allocation5 [shape = 'u8[65536]{0}', space=vmem, size = 0x10000, scoped, tag = 'input window, operand 1, single buffered']
    #allocation6 [shape = 's32[1]{0}', space=sflag, size = 0x4, scoped, tag = 'scoped memory for tpu_custom_call.1']
    #allocation7 [shape = 'u8[65536]{0}', space=vmem, size = 0x10000, scoped, tag = 'input window, operand 2, single buffered']
    #allocation8 [shape = 'u8[4096]{0}', space=vmem, size = 0x1000, scoped, tag = 'output window, operand 0, single buffered']
    %9 = vsyncpa [#allocation3], 0
    %10 = vsyncpa [#allocation6], 0
    %11 = vsyncpa [#allocation4], 0
    // Predicated region
    $region2: #{tpu_custom_call.1} parent=1 // pred_check
      _
    $region3: #{tpu_custom_call.1} parent=1 // pred_check_branch
      %13 = sbr.rel (0) target = $region5
    $region4: #{tpu_custom_call.1} parent=1 // pred_region
      %15 = vsyncadd [#allocation3], 0
      %s16 = sshll.u32 %s0, 4
      %s17 = int_to_ptr.hbm [resolvable:$true] %s16
      %s18 = sshll.u32 [#allocation2], 4
      %s19 = int_to_ptr.vmem [resolvable:$true] %s18
      %24 = dma.hbm_to_vmem [thread:$0]  %s17, 1024, %s19, [#allocation3], 64, 64, 4
    $region5: #{tpu_custom_call.1} parent=1 // pred_fallthru
      _
    // Predicated region
    $region6: #{tpu_custom_call.1} parent=1 // pred_check
      _
    $region7: #{tpu_custom_call.1} parent=1 // pred_check_branch
      %26 = sbr.rel (0) target = $region9
    $region8: #{tpu_custom_call.1} parent=1 // pred_region
      %28 = vsyncadd [#allocation6], 0
      %s29 = sshll.u32 %s1, 4
      %s30 = int_to_ptr.hbm [resolvable:$true] %s29
      %s31 = sshll.u32 [#allocation5], 4
      %s32 = int_to_ptr.vmem [resolvable:$true] %s31
      %37 = dma.hbm_to_vmem [thread:$0]  %s30, 2048, %s32, [#allocation6], 128, 128, 8
    $region9: #{tpu_custom_call.1} parent=1 // pred_fallthru
      _
    // Predicated region
    $region10: #{tpu_custom_call.1} parent=1 // pred_check
      _
    $region11: #{tpu_custom_call.1} parent=1 // pred_check_branch
      %39 = sbr.rel (0) target = $region13
    $region12: #{tpu_custom_call.1} parent=1 // pred_region
      %41 = vsyncadd [#allocation6], 0
      %s42 = sshll.u32 %s2, 4
      %s43 = int_to_ptr.hbm [resolvable:$true] %s42
      %s44 = sshll.u32 [#allocation7], 4
      %s45 = int_to_ptr.vmem [resolvable:$true] %s44
      %50 = dma.hbm_to_vmem [thread:$0]  %s43, 2048, %s45, [#allocation6], 64, 64, 4
    $region13: #{tpu_custom_call.1} parent=1 // pred_fallthru
      _
    // Predicated region
    $region14: #{tpu_custom_call.1} parent=1 // pred_check
      _
    $region15: #{tpu_custom_call.1} parent=1 // pred_check_branch
      %52 = sbr.rel (0) target = $region17
    $region16: #{tpu_custom_call.1} parent=1 // pred_region
      _
    $region17: #{tpu_custom_call.1} parent=1 // pred_fallthru
      _
    // Predicated region
    $region18: #{tpu_custom_call.1} parent=1 // pred_check
      _
    $region19: #{tpu_custom_call.1} parent=1 // pred_check_branch
      %54 = sbr.rel (0) target = $region21
    $region20: #{tpu_custom_call.1} parent=1 // pred_region
      %56 = dma.done [#allocation3], 1024
    $region21: #{tpu_custom_call.1} parent=1 // pred_fallthru
      _
    // Predicated region
    $region22: #{tpu_custom_call.1} parent=1 // pred_check
      _
    $region23: #{tpu_custom_call.1} parent=1 // pred_check_branch
      %58 = sbr.rel (0) target = $region25
    $region24: #{tpu_custom_call.1} parent=1 // pred_region
      %60 = dma.done [#allocation6], 2048
    $region25: #{tpu_custom_call.1} parent=1 // pred_fallthru
      _
    // Predicated region
    $region26: #{tpu_custom_call.1} parent=1 // pred_check
      _
    $region27: #{tpu_custom_call.1} parent=1 // pred_check_branch
      %62 = sbr.rel (0) target = $region29
    $region28: #{tpu_custom_call.1} parent=1 // pred_region
      %64 = dma.done [#allocation6], 2048
    $region29: #{tpu_custom_call.1} parent=1 // pred_fallthru
      _
    %v66 = vld [vmem:[#allocation2] sm:$0xf]
    %v67 = vld [vmem:[#allocation2 + $0x4] sm:$0xf]
    %v68 = vld [vmem:[#allocation2 + $0x8] sm:$0xf]
    %v69 = vld [vmem:[#allocation2 + $0xc] sm:$0xf]
    %v70 = vld [vmem:[#allocation2 + $0x10] sm:$0xf]
    %v71 = vld [vmem:[#allocation2 + $0x14] sm:$0xf]
    %v72 = vld [vmem:[#allocation2 + $0x18] sm:$0xf]
    %v73 = vld [vmem:[#allocation2 + $0x1c] sm:$0xf]
    %v74 = vld [vmem:[#allocation2 + $0x20] sm:$0xf]
    %v75 = vld [vmem:[#allocation2 + $0x24] sm:$0xf]
    %v76 = vld [vmem:[#allocation2 + $0x28] sm:$0xf]
    %v77 = vld [vmem:[#allocation2 + $0x2c] sm:$0xf]
    %v78 = vld [vmem:[#allocation2 + $0x30] sm:$0xf]
    %v79 = vld [vmem:[#allocation2 + $0x34] sm:$0xf]
    %v80 = vld [vmem:[#allocation2 + $0x38] sm:$0xf]
    %v81 = vld [vmem:[#allocation2 + $0x3c] sm:$0xf]
    %v82 = vld [vmem:[#allocation5] sm:$0xff]
    %v83 = vld [vmem:[#allocation5 + $0x8] sm:$0xff]
    %v84 = vld [vmem:[#allocation5 + $0x10] sm:$0xff]
    %v85 = vld [vmem:[#allocation5 + $0x18] sm:$0xff]
    %v86 = vld [vmem:[#allocation5 + $0x20] sm:$0xff]
    %v87 = vld [vmem:[#allocation5 + $0x28] sm:$0xff]
    %v88 = vld [vmem:[#allocation5 + $0x30] sm:$0xff]
    %v89 = vld [vmem:[#allocation5 + $0x38] sm:$0xff]
    %v90 = vld [vmem:[#allocation5 + $0x40] sm:$0xff]
    %v91 = vld [vmem:[#allocation5 + $0x48] sm:$0xff]
    %v92 = vld [vmem:[#allocation5 + $0x50] sm:$0xff]
    %v93 = vld [vmem:[#allocation5 + $0x58] sm:$0xff]
    %v94 = vld [vmem:[#allocation5 + $0x60] sm:$0xff]
    %v95 = vld [vmem:[#allocation5 + $0x68] sm:$0xff]
    %v96 = vld [vmem:[#allocation5 + $0x70] sm:$0xff]
    %v97 = vld [vmem:[#allocation5 + $0x78] sm:$0xff]
    %v98 = vld [vmem:[#allocation7] sm:$0xf]
    %v99 = vld [vmem:[#allocation7 + $0x4] sm:$0xf]
    %v100 = vld [vmem:[#allocation7 + $0x8] sm:$0xf]
    %v101 = vld [vmem:[#allocation7 + $0xc] sm:$0xf]
    %v102 = vld [vmem:[#allocation7 + $0x10] sm:$0xf]
    %v103 = vld [vmem:[#allocation7 + $0x14] sm:$0xf]
    %v104 = vld [vmem:[#allocation7 + $0x18] sm:$0xf]
    %v105 = vld [vmem:[#allocation7 + $0x1c] sm:$0xf]
    %v106 = vld [vmem:[#allocation7 + $0x20] sm:$0xf]
    %v107 = vld [vmem:[#allocation7 + $0x24] sm:$0xf]
    %v108 = vld [vmem:[#allocation7 + $0x28] sm:$0xf]
    %v109 = vld [vmem:[#allocation7 + $0x2c] sm:$0xf]
    %v110 = vld [vmem:[#allocation7 + $0x30] sm:$0xf]
    %v111 = vld [vmem:[#allocation7 + $0x34] sm:$0xf]
    %v112 = vld [vmem:[#allocation7 + $0x38] sm:$0xf]
    %v113 = vld [vmem:[#allocation7 + $0x3c] sm:$0xf]
    %v114 = vld [vmem:[%s3] sm:$0x1]
    %v115 = vpack.c.bf16 %v83, %v82
    %v116 = vpack.c.bf16 %v85, %v84
    %v117 = vpack.c.bf16 %v87, %v86
    %v118 = vpack.c.bf16 %v89, %v88
    %v119 = vpack.c.bf16 %v91, %v90
    %v120 = vpack.c.bf16 %v93, %v92
    %v121 = vpack.c.bf16 %v95, %v94
    %v122 = vpack.c.bf16 %v97, %v96
    %v124 = vperm.slane %v114, 0
    %v142 = vunpack.c.l.b16 %v98
    %v143 = vunpack.c.l.b16 %v99
    %v144 = vunpack.c.l.b16 %v100
    %v145 = vunpack.c.l.b16 %v101
    %v146 = vunpack.c.l.b16 %v102
    %v147 = vunpack.c.l.b16 %v103
    %v148 = vunpack.c.l.b16 %v104
    %v149 = vunpack.c.l.b16 %v105
    %v150 = vunpack.c.l.b16 %v106
    %v151 = vunpack.c.l.b16 %v107
    %v152 = vunpack.c.l.b16 %v108
    %v153 = vunpack.c.l.b16 %v109
    %v154 = vunpack.c.l.b16 %v110
    %v155 = vunpack.c.l.b16 %v111
    %v156 = vunpack.c.l.b16 %v112
    %v157 = vunpack.c.l.b16 %v113
    %v158 = vpack.c.b16 %v143, %v142
    %v159 = vpack.c.b16 %v145, %v144
    %v160 = vpack.c.b16 %v147, %v146
    %v161 = vpack.c.b16 %v149, %v148
    %v162 = vpack.c.b16 %v151, %v150
    %v163 = vpack.c.b16 %v153, %v152
    %v164 = vpack.c.b16 %v155, %v154
    %v165 = vpack.c.b16 %v157, %v156
    %174 = vmatpush.bf16.msra.mxu0 %v165
    %175 = vmatpush.bf16.msra.mxu0 %v164
    %176 = vmatpush.bf16.msra.mxu0 %v163
    %177 = vmatpush.bf16.msra.mxu0 %v162
    %178 = vmatpush.bf16.msra.mxu0 %v161
    %179 = vmatpush.bf16.msra.mxu0 %v160
    %180 = vmatpush.bf16.msra.mxu0 %v159
    %181 = vmatpush.bf16.msra.mxu0 %v158
    %182 = vmatmul.bf16.gmra.mxu0 %v115
    %v183 = vpop.f32.mrf.mxu0
    %v184 = vadd.f32 %v124, %v183
    %v185 = vpop.f32.mrf.mxu0
    %v186 = vadd.f32 %v124, %v185
    %187 = vmatmul.bf16.gmra.mxu0 %v116
    %v188 = vpop.f32.mrf.mxu0
    %v189 = vadd.f32 %v124, %v188
    %v190 = vpop.f32.mrf.mxu0
    %v191 = vadd.f32 %v124, %v190
    %192 = vmatmul.bf16.gmra.mxu0 %v117
    %v193 = vpop.f32.mrf.mxu0
    %v194 = vadd.f32 %v124, %v193
    %v195 = vpop.f32.mrf.mxu0
    %v196 = vadd.f32 %v124, %v195
    %197 = vmatmul.bf16.gmra.mxu0 %v118
    %v198 = vpop.f32.mrf.mxu0
    %v199 = vadd.f32 %v124, %v198
    %v200 = vpop.f32.mrf.mxu0
    %v201 = vadd.f32 %v124, %v200
    %202 = vmatmul.bf16.gmra.mxu0 %v119
    %v203 = vpop.f32.mrf.mxu0
    %v204 = vadd.f32 %v124, %v203
    %v205 = vpop.f32.mrf.mxu0
    %v206 = vadd.f32 %v124, %v205
    %207 = vmatmul.bf16.gmra.mxu0 %v120
    %v208 = vpop.f32.mrf.mxu0
    %v209 = vadd.f32 %v124, %v208
    %v210 = vpop.f32.mrf.mxu0
    %v211 = vadd.f32 %v124, %v210
    %212 = vmatmul.bf16.gmra.mxu0 %v121
    %v213 = vpop.f32.mrf.mxu0
    %v214 = vadd.f32 %v124, %v213
    %v215 = vpop.f32.mrf.mxu0
    %v216 = vadd.f32 %v124, %v215
    %217 = vmatmul.bf16.gmra.mxu0 %v122
    %v218 = vpop.f32.mrf.mxu0
    %v219 = vadd.f32 %v124, %v218
    %v220 = vpop.f32.mrf.mxu0
    %v221 = vadd.f32 %v124, %v220
    %222 = vdwg.mxu0
    %v223 = vmax.f32 %v184, 0.0
    %v224 = vmax.f32 %v186, 0.0
    %v225 = vmax.f32 %v189, 0.0
    %v226 = vmax.f32 %v191, 0.0
    %v227 = vmax.f32 %v194, 0.0
    %v228 = vmax.f32 %v196, 0.0
    %v229 = vmax.f32 %v199, 0.0
    %v230 = vmax.f32 %v201, 0.0
    %v231 = vmax.f32 %v204, 0.0
    %v232 = vmax.f32 %v206, 0.0
    %v233 = vmax.f32 %v209, 0.0
    %v234 = vmax.f32 %v211, 0.0
    %v235 = vmax.f32 %v214, 0.0
    %v236 = vmax.f32 %v216, 0.0
    %v237 = vmax.f32 %v219, 0.0
    %v238 = vmax.f32 %v221, 0.0
    %v239 = vpack.c.bf16 %v223, %v223
    %v240 = vpack.c.bf16 %v224, %v224
    %v241 = vpack.c.bf16 %v225, %v225
    %v242 = vpack.c.bf16 %v226, %v226
    %v243 = vpack.c.bf16 %v227, %v227
    %v244 = vpack.c.bf16 %v228, %v228
    %v245 = vpack.c.bf16 %v229, %v229
    %v246 = vpack.c.bf16 %v230, %v230
    %v247 = vpack.c.bf16 %v231, %v231
    %v248 = vpack.c.bf16 %v232, %v232
    %v249 = vpack.c.bf16 %v233, %v233
    %v250 = vpack.c.bf16 %v234, %v234
    %v251 = vpack.c.bf16 %v235, %v235
    %v252 = vpack.c.bf16 %v236, %v236
    %v253 = vpack.c.bf16 %v237, %v237
    %v254 = vpack.c.bf16 %v238, %v238
    %v257 = vunpack.c.l.b16 %v66
    %v258 = vunpack.c.l.b16 %v67
    %v259 = vpack.c.b16 %v258, %v257
    %v262 = vunpack.c.l.b16 %v239
    %v263 = vunpack.c.l.b16 %v240
    %v264 = vpack.c.b16 %v263, %v262
    %vm266 = vcmask 130048
    %v268 = vsel %vm266, %v259, 0
    %270 = vmatpush.bf16.msra.mxu0 0
    %271 = vmatpush.bf16.msra.mxu0 0
    %272 = vmatpush.bf16.msra.mxu0 0
    %273 = vmatpush.bf16.msra.mxu0 0
    %274 = vmatpush.bf16.msra.mxu0 0
    %275 = vmatpush.bf16.msra.mxu0 0
    %276 = vmatpush.bf16.msra.mxu0 0
    %277 = vmatpush.bf16.msra.mxu0 %v264
    %278 = vmatmul.bf16.gmra.mxu0 %v268
    %v279 = vpop.f32.mrf.mxu0
    %v280 = vadd.f32 0.0, %v279
    %v281 = vpop.f32.mrf.mxu0
    %v282 = vadd.f32 0.0, %v281
    %283 = vdwg.mxu0
    %v286 = vunpack.c.l.b16 %v68
    %v287 = vunpack.c.l.b16 %v69
    %v288 = vpack.c.b16 %v287, %v286
    %v291 = vunpack.c.l.b16 %v241
    %v292 = vunpack.c.l.b16 %v242
    %v293 = vpack.c.b16 %v292, %v291
    %v296 = vsel %vm266, %v288, 0
    %298 = vmatpush.bf16.msra.mxu0 0
    %299 = vmatpush.bf16.msra.mxu0 0
    %300 = vmatpush.bf16.msra.mxu0 0
    %301 = vmatpush.bf16.msra.mxu0 0
    %302 = vmatpush.bf16.msra.mxu0 0
    %303 = vmatpush.bf16.msra.mxu0 0
    %304 = vmatpush.bf16.msra.mxu0 0
    %305 = vmatpush.bf16.msra.mxu0 %v293
    %306 = vmatmul.bf16.gmra.mxu0 %v296
    %v307 = vpop.f32.mrf.mxu0
    %v308 = vadd.f32 0.0, %v307
    %v309 = vpop.f32.mrf.mxu0
    %v310 = vadd.f32 0.0, %v309
    %311 = vdwg.mxu0
    %v314 = vunpack.c.l.b16 %v70
    %v315 = vunpack.c.l.b16 %v71
    %v316 = vpack.c.b16 %v315, %v314
    %v319 = vunpack.c.l.b16 %v243
    %v320 = vunpack.c.l.b16 %v244
    %v321 = vpack.c.b16 %v320, %v319
    %v324 = vsel %vm266, %v316, 0
    %326 = vmatpush.bf16.msra.mxu0 0
    %327 = vmatpush.bf16.msra.mxu0 0
    %328 = vmatpush.bf16.msra.mxu0 0
    %329 = vmatpush.bf16.msra.mxu0 0
    %330 = vmatpush.bf16.msra.mxu0 0
    %331 = vmatpush.bf16.msra.mxu0 0
    %332 = vmatpush.bf16.msra.mxu0 0
    %333 = vmatpush.bf16.msra.mxu0 %v321
    %334 = vmatmul.bf16.gmra.mxu0 %v324
    %v335 = vpop.f32.mrf.mxu0
    %v336 = vadd.f32 0.0, %v335
    %v337 = vpop.f32.mrf.mxu0
    %v338 = vadd.f32 0.0, %v337
    %339 = vdwg.mxu0
    %v342 = vunpack.c.l.b16 %v72
    %v343 = vunpack.c.l.b16 %v73
    %v344 = vpack.c.b16 %v343, %v342
    %v347 = vunpack.c.l.b16 %v245
    %v348 = vunpack.c.l.b16 %v246
    %v349 = vpack.c.b16 %v348, %v347
    %v352 = vsel %vm266, %v344, 0
    %354 = vmatpush.bf16.msra.mxu0 0
    %355 = vmatpush.bf16.msra.mxu0 0
    %356 = vmatpush.bf16.msra.mxu0 0
    %357 = vmatpush.bf16.msra.mxu0 0
    %358 = vmatpush.bf16.msra.mxu0 0
    %359 = vmatpush.bf16.msra.mxu0 0
    %360 = vmatpush.bf16.msra.mxu0 0
    %361 = vmatpush.bf16.msra.mxu0 %v349
    %362 = vmatmul.bf16.gmra.mxu0 %v352
    %v363 = vpop.f32.mrf.mxu0
    %v364 = vadd.f32 0.0, %v363
    %v365 = vpop.f32.mrf.mxu0
    %v366 = vadd.f32 0.0, %v365
    %367 = vdwg.mxu0
    %v370 = vunpack.c.l.b16 %v74
    %v371 = vunpack.c.l.b16 %v75
    %v372 = vpack.c.b16 %v371, %v370
    %v375 = vunpack.c.l.b16 %v247
    %v376 = vunpack.c.l.b16 %v248
    %v377 = vpack.c.b16 %v376, %v375
    %v380 = vsel %vm266, %v372, 0
    %382 = vmatpush.bf16.msra.mxu0 0
    %383 = vmatpush.bf16.msra.mxu0 0
    %384 = vmatpush.bf16.msra.mxu0 0
    %385 = vmatpush.bf16.msra.mxu0 0
    %386 = vmatpush.bf16.msra.mxu0 0
    %387 = vmatpush.bf16.msra.mxu0 0
    %388 = vmatpush.bf16.msra.mxu0 0
    %389 = vmatpush.bf16.msra.mxu0 %v377
    %390 = vmatmul.bf16.gmra.mxu0 %v380
    %v391 = vpop.f32.mrf.mxu0
    %v392 = vadd.f32 0.0, %v391
    %v393 = vpop.f32.mrf.mxu0
    %v394 = vadd.f32 0.0, %v393
    %395 = vdwg.mxu0
    %v398 = vunpack.c.l.b16 %v76
    %v399 = vunpack.c.l.b16 %v77
    %v400 = vpack.c.b16 %v399, %v398
    %v403 = vunpack.c.l.b16 %v249
    %v404 = vunpack.c.l.b16 %v250
    %v405 = vpack.c.b16 %v404, %v403
    %v408 = vsel %vm266, %v400, 0
    %410 = vmatpush.bf16.msra.mxu0 0
    %411 = vmatpush.bf16.msra.mxu0 0
    %412 = vmatpush.bf16.msra.mxu0 0
    %413 = vmatpush.bf16.msra.mxu0 0
    %414 = vmatpush.bf16.msra.mxu0 0
    %415 = vmatpush.bf16.msra.mxu0 0
    %416 = vmatpush.bf16.msra.mxu0 0
    %417 = vmatpush.bf16.msra.mxu0 %v405
    %418 = vmatmul.bf16.gmra.mxu0 %v408
    %v419 = vpop.f32.mrf.mxu0
    %v420 = vadd.f32 0.0, %v419
    %v421 = vpop.f32.mrf.mxu0
    %v422 = vadd.f32 0.0, %v421
    %423 = vdwg.mxu0
    %v426 = vunpack.c.l.b16 %v78
    %v427 = vunpack.c.l.b16 %v79
    %v428 = vpack.c.b16 %v427, %v426
    %v431 = vunpack.c.l.b16 %v251
    %v432 = vunpack.c.l.b16 %v252
    %v433 = vpack.c.b16 %v432, %v431
    %v436 = vsel %vm266, %v428, 0
    %438 = vmatpush.bf16.msra.mxu0 0
    %439 = vmatpush.bf16.msra.mxu0 0
    %440 = vmatpush.bf16.msra.mxu0 0
    %441 = vmatpush.bf16.msra.mxu0 0
    %442 = vmatpush.bf16.msra.mxu0 0
    %443 = vmatpush.bf16.msra.mxu0 0
    %444 = vmatpush.bf16.msra.mxu0 0
    %445 = vmatpush.bf16.msra.mxu0 %v433
    %446 = vmatmul.bf16.gmra.mxu0 %v436
    %v447 = vpop.f32.mrf.mxu0
    %v448 = vadd.f32 0.0, %v447
    %v449 = vpop.f32.mrf.mxu0
    %v450 = vadd.f32 0.0, %v449
    %451 = vdwg.mxu0
    %v454 = vunpack.c.l.b16 %v80
    %v455 = vunpack.c.l.b16 %v81
    %v456 = vpack.c.b16 %v455, %v454
    %v459 = vunpack.c.l.b16 %v253
    %v460 = vunpack.c.l.b16 %v254
    %v461 = vpack.c.b16 %v460, %v459
    %v464 = vsel %vm266, %v456, 0
    %466 = vmatpush.bf16.msra.mxu0 0
    %467 = vmatpush.bf16.msra.mxu0 0
    %468 = vmatpush.bf16.msra.mxu0 0
    %469 = vmatpush.bf16.msra.mxu0 0
    %470 = vmatpush.bf16.msra.mxu0 0
    %471 = vmatpush.bf16.msra.mxu0 0
    %472 = vmatpush.bf16.msra.mxu0 0
    %473 = vmatpush.bf16.msra.mxu0 %v461
    %474 = vmatmul.bf16.gmra.mxu0 %v464
    %v475 = vpop.f32.mrf.mxu0
    %v476 = vadd.f32 0.0, %v475
    %v477 = vpop.f32.mrf.mxu0
    %v478 = vadd.f32 0.0, %v477
    %479 = vdwg.mxu0
    %s480 = scalar_lea.vmem [#allocation7], 64
    %v481 = vld [vmem:[%s480] sm:$0xf]
    %v482 = vld [vmem:[%s480 + $0x4] sm:$0xf]
    %v483 = vld [vmem:[%s480 + $0x8] sm:$0xf]
    %v484 = vld [vmem:[%s480 + $0xc] sm:$0xf]
    %v485 = vld [vmem:[%s480 + $0x10] sm:$0xf]
    %v486 = vld [vmem:[%s480 + $0x14] sm:$0xf]
    %v487 = vld [vmem:[%s480 + $0x18] sm:$0xf]
    %v488 = vld [vmem:[%s480 + $0x1c] sm:$0xf]
    %v489 = vld [vmem:[%s480 + $0x20] sm:$0xf]
    %v490 = vld [vmem:[%s480 + $0x24] sm:$0xf]
    %v491 = vld [vmem:[%s480 + $0x28] sm:$0xf]
    %v492 = vld [vmem:[%s480 + $0x2c] sm:$0xf]
    %v493 = vld [vmem:[%s480 + $0x30] sm:$0xf]
    %v494 = vld [vmem:[%s480 + $0x34] sm:$0xf]
    %v495 = vld [vmem:[%s480 + $0x38] sm:$0xf]
    %v496 = vld [vmem:[%s480 + $0x3c] sm:$0xf]
    %s497 = scalar_lea.vmem %s3, 1
    %v498 = vld [vmem:[%s497] sm:$0x1]
    %v499 = vpack.c.bf16 %v282, %v280
    %v500 = vpack.c.bf16 %v310, %v308
    %v501 = vpack.c.bf16 %v338, %v336
    %v502 = vpack.c.bf16 %v366, %v364
    %v503 = vpack.c.bf16 %v394, %v392
    %v504 = vpack.c.bf16 %v422, %v420
    %v505 = vpack.c.bf16 %v450, %v448
    %v506 = vpack.c.bf16 %v478, %v476
    %v508 = vperm.slane %v498, 0
    %v526 = vunpack.c.l.b16 %v481
    %v527 = vunpack.c.l.b16 %v482
    %v528 = vunpack.c.l.b16 %v483
    %v529 = vunpack.c.l.b16 %v484
    %v530 = vunpack.c.l.b16 %v485
    %v531 = vunpack.c.l.b16 %v486
    %v532 = vunpack.c.l.b16 %v487
    %v533 = vunpack.c.l.b16 %v488
    %v534 = vunpack.c.l.b16 %v489
    %v535 = vunpack.c.l.b16 %v490
    %v536 = vunpack.c.l.b16 %v491
    %v537 = vunpack.c.l.b16 %v492
    %v538 = vunpack.c.l.b16 %v493
    %v539 = vunpack.c.l.b16 %v494
    %v540 = vunpack.c.l.b16 %v495
    %v541 = vunpack.c.l.b16 %v496
    %v542 = vpack.c.b16 %v527, %v526
    %v543 = vpack.c.b16 %v529, %v528
    %v544 = vpack.c.b16 %v531, %v530
    %v545 = vpack.c.b16 %v533, %v532
    %v546 = vpack.c.b16 %v535, %v534
    %v547 = vpack.c.b16 %v537, %v536
    %v548 = vpack.c.b16 %v539, %v538
    %v549 = vpack.c.b16 %v541, %v540
    %558 = vmatpush.bf16.msra.mxu0 %v549
    %559 = vmatpush.bf16.msra.mxu0 %v548
    %560 = vmatpush.bf16.msra.mxu0 %v547
    %561 = vmatpush.bf16.msra.mxu0 %v546
    %562 = vmatpush.bf16.msra.mxu0 %v545
    %563 = vmatpush.bf16.msra.mxu0 %v544
    %564 = vmatpush.bf16.msra.mxu0 %v543
    %565 = vmatpush.bf16.msra.mxu0 %v542
    %566 = vmatmul.bf16.gmra.mxu0 %v499
    %v567 = vpop.f32.mrf.mxu0
    %v568 = vadd.f32 %v508, %v567
    %v569 = vpop.f32.mrf.mxu0
    %v570 = vadd.f32 %v508, %v569
    %571 = vmatmul.bf16.gmra.mxu0 %v500
    %v572 = vpop.f32.mrf.mxu0
    %v573 = vadd.f32 %v508, %v572
    %v574 = vpop.f32.mrf.mxu0
    %v575 = vadd.f32 %v508, %v574
    %576 = vmatmul.bf16.gmra.mxu0 %v501
    %v577 = vpop.f32.mrf.mxu0
    %v578 = vadd.f32 %v508, %v577
    %v579 = vpop.f32.mrf.mxu0
    %v580 = vadd.f32 %v508, %v579
    %581 = vmatmul.bf16.gmra.mxu0 %v502
    %v582 = vpop.f32.mrf.mxu0
    %v583 = vadd.f32 %v508, %v582
    %v584 = vpop.f32.mrf.mxu0
    %v585 = vadd.f32 %v508, %v584
    %586 = vmatmul.bf16.gmra.mxu0 %v503
    %v587 = vpop.f32.mrf.mxu0
    %v588 = vadd.f32 %v508, %v587
    %v589 = vpop.f32.mrf.mxu0
    %v590 = vadd.f32 %v508, %v589
    %591 = vmatmul.bf16.gmra.mxu0 %v504
    %v592 = vpop.f32.mrf.mxu0
    %v593 = vadd.f32 %v508, %v592
    %v594 = vpop.f32.mrf.mxu0
    %v595 = vadd.f32 %v508, %v594
    %596 = vmatmul.bf16.gmra.mxu0 %v505
    %v597 = vpop.f32.mrf.mxu0
    %v598 = vadd.f32 %v508, %v597
    %v599 = vpop.f32.mrf.mxu0
    %v600 = vadd.f32 %v508, %v599
    %601 = vmatmul.bf16.gmra.mxu0 %v506
    %v602 = vpop.f32.mrf.mxu0
    %v603 = vadd.f32 %v508, %v602
    %v604 = vpop.f32.mrf.mxu0
    %v605 = vadd.f32 %v508, %v604
    %606 = vdwg.mxu0
    %v607 = vmax.f32 %v568, 0.0
    %v608 = vmax.f32 %v570, 0.0
    %v609 = vmax.f32 %v573, 0.0
    %v610 = vmax.f32 %v575, 0.0
    %v611 = vmax.f32 %v578, 0.0
    %v612 = vmax.f32 %v580, 0.0
    %v613 = vmax.f32 %v583, 0.0
    %v614 = vmax.f32 %v585, 0.0
    %v615 = vmax.f32 %v588, 0.0
    %v616 = vmax.f32 %v590, 0.0
    %v617 = vmax.f32 %v593, 0.0
    %v618 = vmax.f32 %v595, 0.0
    %v619 = vmax.f32 %v598, 0.0
    %v620 = vmax.f32 %v600, 0.0
    %v621 = vmax.f32 %v603, 0.0
    %v622 = vmax.f32 %v605, 0.0
    %v623 = vpack.c.bf16 %v607, %v607
    %v624 = vpack.c.bf16 %v608, %v608
    %v625 = vpack.c.bf16 %v609, %v609
    %v626 = vpack.c.bf16 %v610, %v610
    %v627 = vpack.c.bf16 %v611, %v611
    %v628 = vpack.c.bf16 %v612, %v612
    %v629 = vpack.c.bf16 %v613, %v613
    %v630 = vpack.c.bf16 %v614, %v614
    %v631 = vpack.c.bf16 %v615, %v615
    %v632 = vpack.c.bf16 %v616, %v616
    %v633 = vpack.c.bf16 %v617, %v617
    %v634 = vpack.c.bf16 %v618, %v618
    %v635 = vpack.c.bf16 %v619, %v619
    %v636 = vpack.c.bf16 %v620, %v620
    %v637 = vpack.c.bf16 %v621, %v621
    %v638 = vpack.c.bf16 %v622, %v622
    %v641 = vunpack.c.l.b16 %v623
    %v642 = vunpack.c.l.b16 %v624
    %v643 = vpack.c.b16 %v642, %v641
    %645 = vmatpush.bf16.msra.mxu0 0
    %646 = vmatpush.bf16.msra.mxu0 0
    %647 = vmatpush.bf16.msra.mxu0 0
    %648 = vmatpush.bf16.msra.mxu0 0
    %649 = vmatpush.bf16.msra.mxu0 0
    %650 = vmatpush.bf16.msra.mxu0 0
    %651 = vmatpush.bf16.msra.mxu0 0
    %652 = vmatpush.bf16.msra.mxu0 %v643
    %653 = vmatmul.bf16.gmra.mxu0 %v268
    %v654 = vpop.f32.mrf.mxu0
    %v655 = vadd.f32 0.0, %v654
    %v656 = vpop.f32.mrf.mxu0
    %v657 = vadd.f32 0.0, %v656
    %658 = vdwg.mxu0
    %v661 = vunpack.c.l.b16 %v625
    %v662 = vunpack.c.l.b16 %v626
    %v663 = vpack.c.b16 %v662, %v661
    %665 = vmatpush.bf16.msra.mxu0 0
    %666 = vmatpush.bf16.msra.mxu0 0
    %667 = vmatpush.bf16.msra.mxu0 0
    %668 = vmatpush.bf16.msra.mxu0 0
    %669 = vmatpush.bf16.msra.mxu0 0
    %670 = vmatpush.bf16.msra.mxu0 0
    %671 = vmatpush.bf16.msra.mxu0 0
    %672 = vmatpush.bf16.msra.mxu0 %v663
    %673 = vmatmul.bf16.gmra.mxu0 %v296
    %v674 = vpop.f32.mrf.mxu0
    %v675 = vadd.f32 0.0, %v674
    %v676 = vpop.f32.mrf.mxu0
    %v677 = vadd.f32 0.0, %v676
    %678 = vdwg.mxu0
    %v681 = vunpack.c.l.b16 %v627
    %v682 = vunpack.c.l.b16 %v628
    %v683 = vpack.c.b16 %v682, %v681
    %685 = vmatpush.bf16.msra.mxu0 0
    %686 = vmatpush.bf16.msra.mxu0 0
    %687 = vmatpush.bf16.msra.mxu0 0
    %688 = vmatpush.bf16.msra.mxu0 0
    %689 = vmatpush.bf16.msra.mxu0 0
    %690 = vmatpush.bf16.msra.mxu0 0
    %691 = vmatpush.bf16.msra.mxu0 0
    %692 = vmatpush.bf16.msra.mxu0 %v683
    %693 = vmatmul.bf16.gmra.mxu0 %v324
    %v694 = vpop.f32.mrf.mxu0
    %v695 = vadd.f32 0.0, %v694
    %v696 = vpop.f32.mrf.mxu0
    %v697 = vadd.f32 0.0, %v696
    %698 = vdwg.mxu0
    %v701 = vunpack.c.l.b16 %v629
    %v702 = vunpack.c.l.b16 %v630
    %v703 = vpack.c.b16 %v702, %v701
    %705 = vmatpush.bf16.msra.mxu0 0
    %706 = vmatpush.bf16.msra.mxu0 0
    %707 = vmatpush.bf16.msra.mxu0 0
    %708 = vmatpush.bf16.msra.mxu0 0
    %709 = vmatpush.bf16.msra.mxu0 0
    %710 = vmatpush.bf16.msra.mxu0 0
    %711 = vmatpush.bf16.msra.mxu0 0
    %712 = vmatpush.bf16.msra.mxu0 %v703
    %713 = vmatmul.bf16.gmra.mxu0 %v352
    %v714 = vpop.f32.mrf.mxu0
    %v715 = vadd.f32 0.0, %v714
    %v716 = vpop.f32.mrf.mxu0
    %v717 = vadd.f32 0.0, %v716
    %718 = vdwg.mxu0
    %v721 = vunpack.c.l.b16 %v631
    %v722 = vunpack.c.l.b16 %v632
    %v723 = vpack.c.b16 %v722, %v721
    %725 = vmatpush.bf16.msra.mxu0 0
    %726 = vmatpush.bf16.msra.mxu0 0
    %727 = vmatpush.bf16.msra.mxu0 0
    %728 = vmatpush.bf16.msra.mxu0 0
    %729 = vmatpush.bf16.msra.mxu0 0
    %730 = vmatpush.bf16.msra.mxu0 0
    %731 = vmatpush.bf16.msra.mxu0 0
    %732 = vmatpush.bf16.msra.mxu0 %v723
    %733 = vmatmul.bf16.gmra.mxu0 %v380
    %v734 = vpop.f32.mrf.mxu0
    %v735 = vadd.f32 0.0, %v734
    %v736 = vpop.f32.mrf.mxu0
    %v737 = vadd.f32 0.0, %v736
    %738 = vdwg.mxu0
    %v741 = vunpack.c.l.b16 %v633
    %v742 = vunpack.c.l.b16 %v634
    %v743 = vpack.c.b16 %v742, %v741
    %745 = vmatpush.bf16.msra.mxu0 0
    %746 = vmatpush.bf16.msra.mxu0 0
    %747 = vmatpush.bf16.msra.mxu0 0
    %748 = vmatpush.bf16.msra.mxu0 0
    %749 = vmatpush.bf16.msra.mxu0 0
    %750 = vmatpush.bf16.msra.mxu0 0
    %751 = vmatpush.bf16.msra.mxu0 0
    %752 = vmatpush.bf16.msra.mxu0 %v743
    %753 = vmatmul.bf16.gmra.mxu0 %v408
    %v754 = vpop.f32.mrf.mxu0
    %v755 = vadd.f32 0.0, %v754
    %v756 = vpop.f32.mrf.mxu0
    %v757 = vadd.f32 0.0, %v756
    %758 = vdwg.mxu0
    %v761 = vunpack.c.l.b16 %v635
    %v762 = vunpack.c.l.b16 %v636
    %v763 = vpack.c.b16 %v762, %v761
    %765 = vmatpush.bf16.msra.mxu0 0
    %766 = vmatpush.bf16.msra.mxu0 0
    %767 = vmatpush.bf16.msra.mxu0 0
    %768 = vmatpush.bf16.msra.mxu0 0
    %769 = vmatpush.bf16.msra.mxu0 0
    %770 = vmatpush.bf16.msra.mxu0 0
    %771 = vmatpush.bf16.msra.mxu0 0
    %772 = vmatpush.bf16.msra.mxu0 %v763
    %773 = vmatmul.bf16.gmra.mxu0 %v436
    %v774 = vpop.f32.mrf.mxu0
    %v775 = vadd.f32 0.0, %v774
    %v776 = vpop.f32.mrf.mxu0
    %v777 = vadd.f32 0.0, %v776
    %778 = vdwg.mxu0
    %v781 = vunpack.c.l.b16 %v637
    %v782 = vunpack.c.l.b16 %v638
    %v783 = vpack.c.b16 %v782, %v781
    %785 = vmatpush.bf16.msra.mxu0 0
    %786 = vmatpush.bf16.msra.mxu0 0
    %787 = vmatpush.bf16.msra.mxu0 0
    %788 = vmatpush.bf16.msra.mxu0 0
    %789 = vmatpush.bf16.msra.mxu0 0
    %790 = vmatpush.bf16.msra.mxu0 0
    %791 = vmatpush.bf16.msra.mxu0 0
    %792 = vmatpush.bf16.msra.mxu0 %v783
    %793 = vmatmul.bf16.gmra.mxu0 %v464
    %v794 = vpop.f32.mrf.mxu0
    %v795 = vadd.f32 0.0, %v794
    %v796 = vpop.f32.mrf.mxu0
    %v797 = vadd.f32 0.0, %v796
    %798 = vdwg.mxu0
    %v799 = vadd.f32 %v655, %v657
    %v800 = vrot.slane %v799, 4
    %v801 = vadd.f32 %v799, %v800
    %v802 = vrot.slane %v801, 2
    %v803 = vadd.f32 %v801, %v802
    %v804 = vrot.slane %v803, 1
    %v805 = vadd.f32 %v803, %v804
    %v806 = vadd.f32 %v675, %v677
    %v807 = vrot.slane %v806, 4
    %v808 = vadd.f32 %v806, %v807
    %v809 = vrot.slane %v808, 2
    %v810 = vadd.f32 %v808, %v809
    %v811 = vrot.slane %v810, 1
    %v812 = vadd.f32 %v810, %v811
    %v813 = vadd.f32 %v695, %v697
    %v814 = vrot.slane %v813, 4
    %v815 = vadd.f32 %v813, %v814
    %v816 = vrot.slane %v815, 2
    %v817 = vadd.f32 %v815, %v816
    %v818 = vrot.slane %v817, 1
    %v819 = vadd.f32 %v817, %v818
    %v820 = vadd.f32 %v715, %v717
    %v821 = vrot.slane %v820, 4
    %v822 = vadd.f32 %v820, %v821
    %v823 = vrot.slane %v822, 2
    %v824 = vadd.f32 %v822, %v823
    %v825 = vrot.slane %v824, 1
    %v826 = vadd.f32 %v824, %v825
    %v827 = vadd.f32 %v735, %v737
    %v828 = vrot.slane %v827, 4
    %v829 = vadd.f32 %v827, %v828
    %v830 = vrot.slane %v829, 2
    %v831 = vadd.f32 %v829, %v830
    %v832 = vrot.slane %v831, 1
    %v833 = vadd.f32 %v831, %v832
    %v834 = vadd.f32 %v755, %v757
    %v835 = vrot.slane %v834, 4
    %v836 = vadd.f32 %v834, %v835
    %v837 = vrot.slane %v836, 2
    %v838 = vadd.f32 %v836, %v837
    %v839 = vrot.slane %v838, 1
    %v840 = vadd.f32 %v838, %v839
    %v841 = vadd.f32 %v775, %v777
    %v842 = vrot.slane %v841, 4
    %v843 = vadd.f32 %v841, %v842
    %v844 = vrot.slane %v843, 2
    %v845 = vadd.f32 %v843, %v844
    %v846 = vrot.slane %v845, 1
    %v847 = vadd.f32 %v845, %v846
    %v848 = vadd.f32 %v795, %v797
    %v849 = vrot.slane %v848, 4
    %v850 = vadd.f32 %v848, %v849
    %v851 = vrot.slane %v850, 2
    %v852 = vadd.f32 %v850, %v851
    %v853 = vrot.slane %v852, 1
    %v854 = vadd.f32 %v852, %v853
    %vm863 = vcmask 1041409
    %v864 = vsel %vm863, %v812, %v805
    %vm865 = vcmask 1042434
    %v866 = vsel %vm865, %v819, %v864
    %vm867 = vcmask 1043459
    %v868 = vsel %vm867, %v826, %v866
    %vm869 = vcmask 1044484
    %v870 = vsel %vm869, %v833, %v868
    %vm871 = vcmask 1045509
    %v872 = vsel %vm871, %v840, %v870
    %vm873 = vcmask 1046534
    %v874 = vsel %vm873, %v847, %v872
    %vm875 = vcmask 1047559
    %v876 = vsel %vm875, %v854, %v874
    %878 = vst [vmem:[#allocation8] sm:$0xff] %v876
    // Predicated region
    $region30: #{tpu_custom_call.1} parent=1 // pred_check
      _
    $region31: #{tpu_custom_call.1} parent=1 // pred_check_branch
      %880 = sbr.rel (0) target = $region33
    $region32: #{tpu_custom_call.1} parent=1 // pred_region
      %882 = vsyncadd [#allocation4], 0
      %s884 = sshll.u32 [#allocation8], 4
      %s885 = int_to_ptr.vmem [resolvable:$true] %s884
      %s886 = sshll.u32 %s4, 4
      %s887 = int_to_ptr.hbm [resolvable:$true] %s886
      %889 = dma.vmem_to_hbm [thread:$0]  %s885, 128, %s887, [#allocation4]
    $region33: #{tpu_custom_call.1} parent=1 // pred_fallthru
      _
    // Predicated region
    $region34: #{tpu_custom_call.1} parent=1 // pred_check
      _
    $region35: #{tpu_custom_call.1} parent=1 // pred_check_branch
      %891 = sbr.rel (0) target = $region37
    $region36: #{tpu_custom_call.1} parent=1 // pred_region
      %893 = dma.done [#allocation4], 128
    $region37: #{tpu_custom_call.1} parent=1 // pred_fallthru
      _
    %894 = vsyncpa [#allocation3], 1
    %895 = vsyncpa [#allocation6], 1
    %896 = vsyncpa [#allocation4], 1

</llo_original>
